<compile_context>
chip_gen: v7x
topology: tpu7x:2x2x1
jax: 0.10.0
libtpu: 0.0.40
codegen_flags: <defaults>
</compile_context>

<pallas_src>
import functools

import jax
import jax.numpy as jnp
from jax import lax
from jax.experimental import pallas as pl
from jax.experimental.pallas import tpu as pltpu

_EPS = 1e-12     # torch F.normalize eps
_SCALE = 20.0    # fixed logit scale from the module


def _adv_loss_kernel(x_ref, wt_ref, b_ref, att_ref, w_ref, o_ref, *, logit_scale):
    """Single-invocation fused kernel.

    x_ref   : (B, D)   features (GRL is identity in forward)
    wt_ref  : (D, A)   classifier weight, pre-transposed (lane-dense)
    b_ref   : (1, A)   classifier bias
    att_ref : (S, A)   seen-class attribute matrix
    w_ref   : (B, B)   f32 pair weights: (temp^2 / count) where labels[i]==labels[j], i<j
    o_ref   : (1, 1)   scalar loss output
    """
    x = x_ref[...].astype(jnp.float32)
    wt = wt_ref[...].astype(jnp.float32)
    b = b_ref[...].astype(jnp.float32)
    att = att_ref[...].astype(jnp.float32)
    w = w_ref[...].astype(jnp.float32)

    # classifier Linear on the MXU, f32 accumulation
    y = jnp.dot(x, wt, preferred_element_type=jnp.float32) + b            # (B, A)

    # L2 row-normalize (torch F.normalize: v / max(||v||, eps))
    y_n = y / jnp.maximum(jnp.sqrt(jnp.sum(y * y, axis=-1, keepdims=True)), _EPS)
    a_n = att / jnp.maximum(jnp.sqrt(jnp.sum(att * att, axis=-1, keepdims=True)), _EPS)

    # cosine logits with the 20.0 scale and the 1/temp softmax temperature folded in
    z = jnp.float32(logit_scale) * lax.dot_general(
        y_n, a_n, (((1,), (1,)), ((), ())),
        preferred_element_type=jnp.float32)                               # (B, S)

    # numerically stable softmax / log-softmax, per row
    z = z - jnp.max(z, axis=-1, keepdims=True)
    e = jnp.exp(z)
    denom = jnp.sum(e, axis=-1, keepdims=True)
    p = e / denom                                                         # softmax     (B, S)
    logp = z - jnp.log(denom)                                             # log-softmax (B, S)

    # per-row p*log(p) with the KLDivLoss 0*log(0):=0 convention (guards underflow)
    plp = jnp.where(p > 0, p * logp, 0.0)                                 # (B, S)

    # pairwise JS:  JS(i,j) = 0.5 * sum_k [ p_ik log p_ik + p_jk log p_jk
    #                                       - (p_ik + p_jk) * log((p_ik + p_jk)/2) ]
    B, S = p.shape
    m2 = p[:, None, :] + p[None, :, :]                                    # (B, B, S) = 2*m
    mix = jnp.where(m2 > 0, m2 * jnp.log(0.5 * m2), 0.0)                  # (B, B, S) = 2*m*log(m)
    js = 0.5 * jnp.sum(plp[:, None, :] + plp[None, :, :] - mix, axis=-1)  # (B, B)

    # pair weights already carry the 1/count mean and the temp**2 factor
    o_ref[...] = jnp.sum(js * w, keepdims=True)                           # (1, 1)


def adversarial_loss(x, w, b, seen_att, labels, temp):
    """Forward pass of AdversarialLoss.

    x        : (B, D) features
    w        : (A, D) classifier Linear weight
    b        : (A,)   classifier Linear bias
    seen_att : (S, A) seen-class attributes
    labels   : (B,)   int labels
    temp     : python float (cfg.JS_Softmax_Temp)
    """
    B, D = x.shape
    A = w.shape[0]
    S = seen_att.shape[0]
    temp = float(temp)

    wt = w.T                                   # (D, A): lane-dense operand for the kernel
    b2 = b.reshape(1, A)

    # host-precomputed pair weights (same label, i < j) — replaces the torch double loop.
    # Fold mean-over-pairs and the final temp**2 scaling into the weights so the kernel
    # ends in a single weighted sum.
    same = labels[:, None] == labels[None, :]
    upper = jnp.triu(jnp.ones((B, B), dtype=bool), k=1)
    pair = (same & upper).astype(jnp.float32)                            # (B, B)
    count = jnp.sum(pair)
    pair_w = pair * jnp.where(count > 0, jnp.float32(temp * temp) / count, 0.0)

    kernel = functools.partial(_adv_loss_kernel, logit_scale=_SCALE / temp)
    out = pl.pallas_call(
        kernel,
        out_shape=jax.ShapeDtypeStruct((1, 1), jnp.float32),
        grid=(1,),
        in_specs=[
            pl.BlockSpec((B, D), lambda i: (0, 0)),
            pl.BlockSpec((D, A), lambda i: (0, 0)),
            pl.BlockSpec((1, A), lambda i: (0, 0)),
            pl.BlockSpec((S, A), lambda i: (0, 0)),
            pl.BlockSpec((B, B), lambda i: (0, 0)),
        ],
        out_specs=pl.BlockSpec((1, 1), lambda i: (0, 0)),
        compiler_params=pltpu.CompilerParams(dimension_semantics=("arbitrary",)),
    )(x, wt, b2, seen_att, pair_w)
    return out[0, 0]


# ---------------- pure-JAX reference (mirrors the torch forward) ----------------

def _js_divergence(p_logits, q_logits, temp):
    p_s = jax.nn.softmax(p_logits / temp)
    q_s = jax.nn.softmax(q_logits / temp)
    log_m = jnp.log((p_s + q_s) / 2.0)

    def kl_sum(target, log_input):
        return jnp.sum(jnp.where(target > 0, target * (jnp.log(target) - log_input), 0.0))

    return (kl_sum(p_s, log_m) + kl_sum(q_s, log_m)) / 2.0


def _reference(x, w, b, seen_att, labels, temp):
    y = x @ w.T + b
    y = y / jnp.maximum(jnp.linalg.norm(y, axis=-1, keepdims=True), _EPS)
    s = seen_att / jnp.maximum(jnp.linalg.norm(seen_att, axis=-1, keepdims=True), _EPS)
    logits = _SCALE * (y @ s.T)

    loss = 0.0
    count = 0
    B = labels.shape[0]
    for i in range(B):
        for j in range(i + 1, B):
            if int(labels[i]) == int(labels[j]):
                count += 1
                loss = loss + _js_divergence(logits[i], logits[j], temp)
    if count > 0:
        loss = loss / count
    return jnp.asarray(loss * temp ** 2, dtype=jnp.float32)


if __name__ == "__main__":
    key = jax.random.PRNGKey(0)
    kx, kw, kb, ka = jax.random.split(key, 4)

    B, D, A, S = 8, 32, 16, 10     # batch, feature dim, attribute dim, num seen classes
    temp = 4.0                     # cfg.JS_Softmax_Temp

    x = jax.random.normal(kx, (B, D), dtype=jnp.float32)
    w = jax.random.normal(kw, (A, D), dtype=jnp.float32) * 0.1
    b = jax.random.normal(kb, (A,), dtype=jnp.float32) * 0.1
    seen_att = jax.random.normal(ka, (S, A), dtype=jnp.float32)
    labels = jnp.array([0, 1, 0, 2, 1, 0, 3, 2], dtype=jnp.int32)   # several same-label pairs

    out = adversarial_loss(x, w, b, seen_att, labels, temp)
    out = jax.block_until_ready(out)

    ref = _reference(x, w, b, seen_att, labels, temp)
    assert out.shape == ()
    assert jnp.allclose(out, ref, atol=1e-4, rtol=1e-4), (float(out), float(ref))

    # also exercise the count == 0 (no same-label pair) path
    labels_unique = jnp.arange(B, dtype=jnp.int32)
    out0 = jax.block_until_ready(adversarial_loss(x, w, b, seen_att, labels_unique, temp))
    ref0 = _reference(x, w, b, seen_att, labels_unique, temp)
    assert jnp.allclose(out0, ref0, atol=1e-6), (float(out0), float(ref0))

    print("KERNEL_OK")
</pallas_src>

<mosaic_0001>
module attributes {stable_mosaic.version = 11 : i64} {
  func.func @_adv_loss_kernel(%arg0: i32, %arg1: memref<8x32xf32, #tpu.memory_space<vmem>>, %arg2: memref<32x16xf32, #tpu.memory_space<vmem>>, %arg3: memref<1x16xf32, #tpu.memory_space<vmem>>, %arg4: memref<10x16xf32, #tpu.memory_space<vmem>>, %arg5: memref<8x8xf32, #tpu.memory_space<vmem>>, %arg6: memref<1x1xf32, #tpu.memory_space<vmem>>) attributes {dimension_semantics = [#tpu.dimension_semantics<arbitrary>], iteration_bounds = array<i64: 1>, scalar_prefetch = 0 : i64, scratch_operands = 0 : i64, tpu.core_type = #tpu.core_type<tc>, window_params = [{pipeline_mode = #tpu.pipeline_mode<synchronous>, transform_indices = @transform_0, window_bounds = array<i64: 8, 32>}, {pipeline_mode = #tpu.pipeline_mode<synchronous>, transform_indices = @transform_1, window_bounds = array<i64: 32, 16>}, {pipeline_mode = #tpu.pipeline_mode<synchronous>, transform_indices = @transform_2, window_bounds = array<i64: 1, 16>}, {pipeline_mode = #tpu.pipeline_mode<synchronous>, transform_indices = @transform_3, window_bounds = array<i64: 10, 16>}, {pipeline_mode = #tpu.pipeline_mode<synchronous>, transform_indices = @transform_4, window_bounds = array<i64: 8, 8>}, {pipeline_mode = #tpu.pipeline_mode<synchronous>, transform_indices = @transform_5, window_bounds = array<i64: 1, 1>}]} {
    %c0 = arith.constant 0 : index
    %c0_0 = arith.constant 0 : index
    %0 = vector.load %arg1[%c0, %c0_0] : memref<8x32xf32, #tpu.memory_space<vmem>>, vector<8x32xf32>
    %c0_1 = arith.constant 0 : index
    %c0_2 = arith.constant 0 : index
    %1 = vector.load %arg2[%c0_1, %c0_2] : memref<32x16xf32, #tpu.memory_space<vmem>>, vector<32x16xf32>
    %c0_3 = arith.constant 0 : index
    %c0_4 = arith.constant 0 : index
    %2 = vector.load %arg3[%c0_3, %c0_4] : memref<1x16xf32, #tpu.memory_space<vmem>>, vector<1x16xf32>
    %c0_5 = arith.constant 0 : index
    %c0_6 = arith.constant 0 : index
    %3 = vector.load %arg4[%c0_5, %c0_6] : memref<10x16xf32, #tpu.memory_space<vmem>>, vector<10x16xf32>
    %c0_7 = arith.constant 0 : index
    %c0_8 = arith.constant 0 : index
    %4 = vector.load %arg5[%c0_7, %c0_8] : memref<8x8xf32, #tpu.memory_space<vmem>>, vector<8x8xf32>
    %cst = arith.constant dense<0.000000e+00> : vector<8x16xf32>
    %5 = tpu.matmul %0, %1, %cst {dimension_numbers = #tpu.dot_dimension_numbers<[1], [0], [0], [1], [0, 0, 1, 1], [], []>} : vector<8x32xf32>, vector<32x16xf32>, vector<8x16xf32> -> vector<8x16xf32>
    %6 = vector.broadcast %2 : vector<1x16xf32> to vector<8x16xf32>
    %7 = arith.addf %5, %6 : vector<8x16xf32>
    %8 = arith.mulf %7, %7 : vector<8x16xf32>
    %cst_9 = arith.constant dense<0.000000e+00> : vector<8xf32>
    %9 = vector.multi_reduction <add>, %8, %cst_9 [1] : vector<8x16xf32> to vector<8xf32>
    %10 = vector.shape_cast %9 : vector<8xf32> to vector<8x1xf32>
    %11 = math.sqrt %10 : vector<8x1xf32>
    %cst_10 = arith.constant 9.99999996E-13 : f32
    %12 = vector.broadcast %cst_10 : f32 to vector<8x1xf32>
    %13 = arith.maximumf %11, %12 : vector<8x1xf32>
    %14 = vector.broadcast %13 : vector<8x1xf32> to vector<8x16xf32>
    %15 = arith.divf %7, %14 : vector<8x16xf32>
    %16 = arith.mulf %3, %3 : vector<10x16xf32>
    %cst_11 = arith.constant dense<0.000000e+00> : vector<10xf32>
    %17 = vector.multi_reduction <add>, %16, %cst_11 [1] : vector<10x16xf32> to vector<10xf32>
    %18 = vector.shape_cast %17 : vector<10xf32> to vector<10x1xf32>
    %19 = math.sqrt %18 : vector<10x1xf32>
    %cst_12 = arith.constant 9.99999996E-13 : f32
    %20 = vector.broadcast %cst_12 : f32 to vector<10x1xf32>
    %21 = arith.maximumf %19, %20 : vector<10x1xf32>
    %22 = vector.broadcast %21 : vector<10x1xf32> to vector<10x16xf32>
    %23 = arith.divf %3, %22 : vector<10x16xf32>
    %cst_13 = arith.constant dense<0.000000e+00> : vector<8x10xf32>
    %24 = tpu.matmul %15, %23, %cst_13 {dimension_numbers = #tpu.dot_dimension_numbers<[1], [1], [0], [0], [0, 0, 1, 0], [], []>} : vector<8x16xf32>, vector<10x16xf32>, vector<8x10xf32> -> vector<8x10xf32>
    %cst_14 = arith.constant 5.000000e+00 : f32
    %25 = vector.broadcast %cst_14 : f32 to vector<8x10xf32>
    %26 = arith.mulf %25, %24 : vector<8x10xf32>
    %cst_15 = arith.constant dense<0xFF800000> : vector<8xf32>
    %27 = vector.multi_reduction <maximumf>, %26, %cst_15 [1] : vector<8x10xf32> to vector<8xf32>
    %28 = vector.shape_cast %27 : vector<8xf32> to vector<8x1xf32>
    %29 = vector.broadcast %28 : vector<8x1xf32> to vector<8x10xf32>
    %30 = arith.subf %26, %29 : vector<8x10xf32>
    %31 = math.exp %30 : vector<8x10xf32>
    %cst_16 = arith.constant dense<0.000000e+00> : vector<8xf32>
    %32 = vector.multi_reduction <add>, %31, %cst_16 [1] : vector<8x10xf32> to vector<8xf32>
    %33 = vector.shape_cast %32 : vector<8xf32> to vector<8x1xf32>
    %34 = vector.broadcast %33 : vector<8x1xf32> to vector<8x10xf32>
    %35 = arith.divf %31, %34 : vector<8x10xf32>
    %36 = math.log %33 : vector<8x1xf32>
    %37 = vector.broadcast %36 : vector<8x1xf32> to vector<8x10xf32>
    %38 = arith.subf %30, %37 : vector<8x10xf32>
    %cst_17 = arith.constant 0.000000e+00 : f32
    %39 = vector.broadcast %cst_17 : f32 to vector<8x10xf32>
    %40 = arith.cmpf ogt, %35, %39 : vector<8x10xf32>
    %41 = arith.mulf %35, %38 : vector<8x10xf32>
    %cst_18 = arith.constant 0.000000e+00 : f32
    %42 = vector.broadcast %cst_18 : f32 to vector<8x10xf32>
    %43 = arith.select %40, %41, %42 : vector<8x10xi1>, vector<8x10xf32>
    %44 = vector.shape_cast %35 : vector<8x10xf32> to vector<8x1x10xf32>
    %45 = vector.shape_cast %35 : vector<8x10xf32> to vector<1x8x10xf32>
    %46 = vector.broadcast %44 : vector<8x1x10xf32> to vector<8x8x10xf32>
    %47 = vector.broadcast %45 : vector<1x8x10xf32> to vector<8x8x10xf32>
    %48 = arith.addf %46, %47 : vector<8x8x10xf32>
    %cst_19 = arith.constant 0.000000e+00 : f32
    %49 = vector.broadcast %cst_19 : f32 to vector<8x8x10xf32>
    %50 = arith.cmpf ogt, %48, %49 : vector<8x8x10xf32>
    %cst_20 = arith.constant 5.000000e-01 : f32
    %51 = vector.broadcast %cst_20 : f32 to vector<8x8x10xf32>
    %52 = arith.mulf %51, %48 : vector<8x8x10xf32>
    %53 = math.log %52 : vector<8x8x10xf32>
    %54 = arith.mulf %48, %53 : vector<8x8x10xf32>
    %cst_21 = arith.constant 0.000000e+00 : f32
    %55 = vector.broadcast %cst_21 : f32 to vector<8x8x10xf32>
    %56 = arith.select %50, %54, %55 : vector<8x8x10xi1>, vector<8x8x10xf32>
    %57 = vector.shape_cast %43 : vector<8x10xf32> to vector<8x1x10xf32>
    %58 = vector.shape_cast %43 : vector<8x10xf32> to vector<1x8x10xf32>
    %59 = vector.broadcast %57 : vector<8x1x10xf32> to vector<8x8x10xf32>
    %60 = vector.broadcast %58 : vector<1x8x10xf32> to vector<8x8x10xf32>
    %61 = arith.addf %59, %60 : vector<8x8x10xf32>
    %62 = arith.subf %61, %56 : vector<8x8x10xf32>
    %cst_22 = arith.constant dense<0.000000e+00> : vector<8x8xf32>
    %63 = vector.multi_reduction <add>, %62, %cst_22 [2] : vector<8x8x10xf32> to vector<8x8xf32>
    %cst_23 = arith.constant 5.000000e-01 : f32
    %64 = vector.broadcast %cst_23 : f32 to vector<8x8xf32>
    %65 = arith.mulf %64, %63 : vector<8x8xf32>
    %66 = arith.mulf %65, %4 : vector<8x8xf32>
    %67 = vector.shape_cast %66 : vector<8x8xf32> to vector<1x8x8xf32>
    %cst_24 = arith.constant dense<0.000000e+00> : vector<1xf32>
    %68 = vector.multi_reduction <add>, %67, %cst_24 [1, 2] : vector<1x8x8xf32> to vector<1xf32>
    %69 = vector.shape_cast %68 : vector<1xf32> to vector<1x1x1xf32>
    %70 = vector.extract %69[0, 0, 0] : f32 from vector<1x1x1xf32>
    %71 = vector.broadcast %70 : f32 to vector<1x1xf32>
    %c0_25 = arith.constant 0 : index
    %c0_26 = arith.constant 0 : index
    %72 = vector.load %arg6[%c0_25, %c0_26] : memref<1x1xf32, #tpu.memory_space<vmem>>, vector<1x1xf32>
    tpu.vector_store %arg6[%c0_25, %c0_26], %71 {strides = array<i32>} : memref<1x1xf32, #tpu.memory_space<vmem>>, vector<1x1xf32>,
    return
  }
  func.func @transform_0(%arg0: i32) -> (i32, i32) {
    %c0_i32 = arith.constant 0 : i32
    %c0_i32_0 = arith.constant 0 : i32
    %c0_i32_1 = arith.constant 0 : i32
    return %c0_i32, %c0_i32_0 : i32, i32
  }
  func.func @transform_1(%arg0: i32) -> (i32, i32) {
    %c0_i32 = arith.constant 0 : i32
    %c0_i32_0 = arith.constant 0 : i32
    %c0_i32_1 = arith.constant 0 : i32
    return %c0_i32, %c0_i32_0 : i32, i32
  }
  func.func @transform_2(%arg0: i32) -> (i32, i32) {
    %c0_i32 = arith.constant 0 : i32
    %c0_i32_0 = arith.constant 0 : i32
    %c0_i32_1 = arith.constant 0 : i32
    return %c0_i32, %c0_i32_0 : i32, i32
  }
  func.func @transform_3(%arg0: i32) -> (i32, i32) {
    %c0_i32 = arith.constant 0 : i32
    %c0_i32_0 = arith.constant 0 : i32
    %c0_i32_1 = arith.constant 0 : i32
    return %c0_i32, %c0_i32_0 : i32, i32
  }
  func.func @transform_4(%arg0: i32) -> (i32, i32) {
    %c0_i32 = arith.constant 0 : i32
    %c0_i32_0 = arith.constant 0 : i32
    %c0_i32_1 = arith.constant 0 : i32
    return %c0_i32, %c0_i32_0 : i32, i32
  }
  func.func @transform_5(%arg0: i32) -> (i32, i32) {
    %c0_i32 = arith.constant 0 : i32
    %c0_i32_0 = arith.constant 0 : i32
    %c0_i32_1 = arith.constant 0 : i32
    return %c0_i32, %c0_i32_0 : i32, i32
  }
}

</mosaic_0001>

<llo_original>
// kernel: tpu_custom_call.1
$region0: #{tpu_custom_call.1}
  #allocation0 [shape = 'u32[]', space=smem, size = 0x4, offset = 0x4, fixed_abs, tag = 'smem constant byte address 0x4 - core index']
  #allocation1 [shape = 'u32[144,128]{1,0:T(1,128)}', space=vmem, size = 0x12000, scoped, tag = 'internal scratch']
  %s0 = inlined_call_operand.vmem [shape: f32[8,32], index: 0, kind: input, shape index: {}]
  %s1 = inlined_call_operand.vmem [shape: f32[32,16], index: 1, kind: input, shape index: {}]
  %s2 = inlined_call_operand.vmem [shape: f32[1,16], index: 2, kind: input, shape index: {}]
  %s3 = inlined_call_operand.vmem [shape: f32[10,16], index: 3, kind: input, shape index: {}]
  %s4 = inlined_call_operand.vmem [shape: f32[8,8], index: 4, kind: input, shape index: {}]
  %s5 = inlined_call_operand.hbm [shape: f32[1,1], index: 5, kind: output, shape index: {}]
  %s6 = sld [smem:[#allocation0]]
  $region30: #{tpu_custom_call.1} parent=0
    _
  %s8 = ssub.s32 1, %s6
  %s9 = scalar_select 0, %s8, %s6
  $region1: #{tpu_custom_call.1} parent=0
    #allocation2 [shape = 'u8[512]{0}', space=vmem, size = 0x400, scoped, tag = 'output window, operand 0, single buffered']
    #allocation3 [shape = 's32[1]{0}', space=sflag, size = 0x4, scoped, tag = 'scoped memory for tpu_custom_call.1']
    %10 = vsyncpa [#allocation3], 0
    // Predicated region
    $region2: #{tpu_custom_call.1} parent=1 // pred_check
      _
    $region3: #{tpu_custom_call.1} parent=1 // pred_check_branch
      %12 = sbr.rel (0) target = $region5
    $region4: #{tpu_custom_call.1} parent=1 // pred_region
      _
    $region5: #{tpu_custom_call.1} parent=1 // pred_fallthru
      _
    // Predicated region
    $region6: #{tpu_custom_call.1} parent=1 // pred_check
      _
    $region7: #{tpu_custom_call.1} parent=1 // pred_check_branch
      %14 = sbr.rel (0) target = $region9
    $region8: #{tpu_custom_call.1} parent=1 // pred_region
      _
    $region9: #{tpu_custom_call.1} parent=1 // pred_fallthru
      _
    // Predicated region
    $region10: #{tpu_custom_call.1} parent=1 // pred_check
      _
    $region11: #{tpu_custom_call.1} parent=1 // pred_check_branch
      %16 = sbr.rel (0) target = $region13
    $region12: #{tpu_custom_call.1} parent=1 // pred_region
      _
    $region13: #{tpu_custom_call.1} parent=1 // pred_fallthru
      _
    // Predicated region
    $region14: #{tpu_custom_call.1} parent=1 // pred_check
      _
    $region15: #{tpu_custom_call.1} parent=1 // pred_check_branch
      %18 = sbr.rel (0) target = $region17
    $region16: #{tpu_custom_call.1} parent=1 // pred_region
      _
    $region17: #{tpu_custom_call.1} parent=1 // pred_fallthru
      _
    // Predicated region
    $region18: #{tpu_custom_call.1} parent=1 // pred_check
      _
    $region19: #{tpu_custom_call.1} parent=1 // pred_check_branch
      %20 = sbr.rel (0) target = $region21
    $region20: #{tpu_custom_call.1} parent=1 // pred_region
      _
    $region21: #{tpu_custom_call.1} parent=1 // pred_fallthru
      _
    %v21 = vld [vmem:[%s0] sm:$0xff]
    %v22 = vld [vmem:[%s1] sm:$0xff]
    %v23 = vld [vmem:[%s1 + $0x8] sm:$0xff]
    %v24 = vld [vmem:[%s1 + $0x10] sm:$0xff]
    %v25 = vld [vmem:[%s1 + $0x18] sm:$0xff]
    %v26 = vld [vmem:[%s2] sm:$0x1]
    %v27 = vld [vmem:[%s3] sm:$0xff]
    %v28 = vld [vmem:[%s3 + $0x8] sm:$0x3]
    %v29 = vld [vmem:[%s4] sm:$0xff]
    %v31 = vlaneseq
    %v32 = vshrl.u32 %v31, 7
    %v33 = vsub.s32 0, %v32
    %v34 = vrot.slane %v26, %v33
    %vm36 = vcmask 261120
    %v38 = vsel %vm36, %v21, 0
    %40 = vmatprep.subr.mxu0 0.0
    %41 = vmatpush1.msra.mxu0 %v22
    %42 = vmatprep.subr.mxu0 0.0
    %43 = vmatpush1.msra.mxu0 %v23
    %44 = vmatprep.subr.mxu0 0.0
    %45 = vmatpush1.msra.mxu0 %v24
    %46 = vmatprep.subr.mxu0 0.0
    %47 = vmatpush1.msra.mxu0 %v25
    %48 = vmatprep.subr.mxu0 0.0
    %49 = vmatpush1.msra.mxu0 0.0
    %50 = vmatprep.subr.mxu0 0.0
    %51 = vmatpush1.msra.mxu0 0.0
    %52 = vmatprep.subr.mxu0 0.0
    %53 = vmatpush1.msra.mxu0 0.0
    %54 = vmatprep.subr.mxu0 0.0
    %55 = vmatpush1.msra.mxu0 0.0
    %56 = vmatprep.subr.mxu0 0.0
    %57 = vmatpush1.msra.mxu0 0.0
    %58 = vmatprep.subr.mxu0 0.0
    %59 = vmatpush1.msra.mxu0 0.0
    %60 = vmatprep.subr.mxu0 0.0
    %61 = vmatpush1.msra.mxu0 0.0
    %62 = vmatprep.subr.mxu0 0.0
    %63 = vmatpush1.msra.mxu0 0.0
    %64 = vmatprep.subr.mxu0 0.0
    %65 = vmatpush1.msra.mxu0 0.0
    %66 = vmatprep.subr.mxu0 0.0
    %67 = vmatpush1.msra.mxu0 0.0
    %68 = vmatprep.subr.mxu0 0.0
    %69 = vmatpush1.msra.mxu0 0.0
    %70 = vmatprep.subr.mxu0 0.0
    %71 = vmatpush1.msra.mxu0 0.0
    %72 = vmatprep.subr.mxu0 0.0
    %73 = vmatpush1.msra.mxu0 0.0
    %74 = vmatprep.subr.mxu0 0.0
    %75 = vmatpush1.msra.mxu0 0.0
    %76 = vmatprep.subr.mxu0 0.0
    %77 = vmatpush1.msra.mxu0 0.0
    %78 = vmatprep.subr.mxu0 0.0
    %79 = vmatpush1.msra.mxu0 0.0
    %80 = vmatprep.subr.mxu0 0.0
    %81 = vmatpush1.msra.mxu0 0.0
    %82 = vmatprep.subr.mxu0 0.0
    %83 = vmatpush1.msra.mxu0 0.0
    %84 = vmatprep.subr.mxu0 0.0
    %85 = vmatpush1.msra.mxu0 0.0
    %86 = vmatprep.subr.mxu0 0.0
    %87 = vmatpush1.msra.mxu0 0.0
    %88 = vmatprep.subr.mxu0 0.0
    %89 = vmatpush1.msra.mxu0 0.0
    %90 = vmatprep.subr.mxu0 0.0
    %91 = vmatpush1.msra.mxu0 0.0
    %92 = vmatprep.subr.mxu0 0.0
    %93 = vmatpush1.msra.mxu0 0.0
    %94 = vmatprep.subr.mxu0 0.0
    %95 = vmatpush1.msra.mxu0 0.0
    %96 = vmatprep.subr.mxu0 0.0
    %97 = vmatpush1.msra.mxu0 0.0
    %98 = vmatprep.subr.mxu0 0.0
    %99 = vmatpush1.msra.mxu0 0.0
    %100 = vmatprep.subr.mxu0 0.0
    %101 = vmatpush1.msra.mxu0 0.0
    %102 = vmatprep.subr.mxu0 0.0
    %103 = vmatpush1.msra.mxu0 0.0
    %104 = vmatprep.mubr.f32.mxu0 0.0
    %105 = vmatmul.mubr.f32.gmra.mrb[0].mxu0 %v38
    %v106 = vpop.f32.mrb[0].mxu0
    %v107 = vadd.f32 %v34, %v106
    %v108 = vpop.f32.mrb[0].mxu0
    %109 = vdwg.mxu0
    %v110 = vmul.f32 %v107, %v107
    %vm111 = vcmask 130048
    %v112 = vsel %vm111, %v110, 0.0
    %113 = vadd.xlane.f32.xlu0 %v112
    %v114 = vpop.xlane.xlu0 %113
    %v115 = vrsqrt.pop %v114
    %v116 = vmul.f32 %v114, %v115
    %vm117 = vcmp.eq.f32.partialorder %v114, inf
    %v118 = vsel %vm117, %v114, %v116
    %vm119 = vcmp.eq.f32.partialorder %v114, 0.0
    %v120 = vand.u32 %v114, 2147483648
    %v121 = vsel %vm119, %v120, %v118
    %v122 = vmax.f32 %v121, 1e-12
    %v123 = vrcp.pop %v122
    %v124 = vmul.f32 %v107, %v123
    %v125 = vmul.f32 %v27, %v27
    %v126 = vmul.f32 %v28, %v28
    %v127 = vsel %vm111, %v125, 0.0
    %128 = vadd.xlane.f32.xlu0 %v127
    %v129 = vpop.xlane.xlu0 %128
    %vm130 = vcmask 123904
    %v131 = vsel %vm130, %v126, 0.0
    %132 = vadd.xlane.f32.xlu0 %v131
    %v133 = vpop.xlane.xlu0 %132
    %v134 = vrsqrt.pop %v129
    %v135 = vmul.f32 %v129, %v134
    %vm136 = vcmp.eq.f32.partialorder %v129, inf
    %v137 = vsel %vm136, %v129, %v135
    %vm138 = vcmp.eq.f32.partialorder %v129, 0.0
    %v139 = vand.u32 %v129, 2147483648
    %v140 = vsel %vm138, %v139, %v137
    %v141 = vrsqrt.pop %v133
    %v142 = vmul.f32 %v133, %v141
    %vm143 = vcmp.eq.f32.partialorder %v133, inf
    %v144 = vsel %vm143, %v133, %v142
    %vm145 = vcmp.eq.f32.partialorder %v133, 0.0
    %v146 = vand.u32 %v133, 2147483648
    %v147 = vsel %vm145, %v146, %v144
    %v148 = vmax.f32 %v140, 1e-12
    %v149 = vmax.f32 %v147, 1e-12
    %v150 = vrcp.pop %v148
    %v151 = vmul.f32 %v27, %v150
    %v152 = vrcp.pop %v149
    %v153 = vmul.f32 %v28, %v152
    %v155 = vsel %vm111, %v124, 0
    %v158 = vsel %vm111, %v151, 0
    %v161 = vsel %vm111, %v153, 0
    %163 = vmatprep.subr.mxu0 0.0
    %164 = vmatpush1.xpose.msra.mxu0 %v158
    %165 = vmatprep.subr.mxu0 0.0
    %166 = vmatpush1.xpose.msra.mxu0 %v161
    %167 = vmatprep.subr.mxu0 0.0
    %168 = vmatpush1.xpose.msra.mxu0 0.0
    %169 = vmatprep.subr.mxu0 0.0
    %170 = vmatpush1.xpose.msra.mxu0 0.0
    %171 = vmatprep.subr.mxu0 0.0
    %172 = vmatpush1.xpose.msra.mxu0 0.0
    %173 = vmatprep.subr.mxu0 0.0
    %174 = vmatpush1.xpose.msra.mxu0 0.0
    %175 = vmatprep.subr.mxu0 0.0
    %176 = vmatpush1.xpose.msra.mxu0 0.0
    %177 = vmatprep.subr.mxu0 0.0
    %178 = vmatpush1.xpose.msra.mxu0 0.0
    %179 = vmatprep.subr.mxu0 0.0
    %180 = vmatpush1.xpose.msra.mxu0 0.0
    %181 = vmatprep.subr.mxu0 0.0
    %182 = vmatpush1.xpose.msra.mxu0 0.0
    %183 = vmatprep.subr.mxu0 0.0
    %184 = vmatpush1.xpose.msra.mxu0 0.0
    %185 = vmatprep.subr.mxu0 0.0
    %186 = vmatpush1.xpose.msra.mxu0 0.0
    %187 = vmatprep.subr.mxu0 0.0
    %188 = vmatpush1.xpose.msra.mxu0 0.0
    %189 = vmatprep.subr.mxu0 0.0
    %190 = vmatpush1.xpose.msra.mxu0 0.0
    %191 = vmatprep.subr.mxu0 0.0
    %192 = vmatpush1.xpose.msra.mxu0 0.0
    %193 = vmatprep.subr.mxu0 0.0
    %194 = vmatpush1.xpose.msra.mxu0 0.0
    %195 = vmatprep.subr.mxu0 0.0
    %196 = vmatpush1.xpose.msra.mxu0 0.0
    %197 = vmatprep.subr.mxu0 0.0
    %198 = vmatpush1.xpose.msra.mxu0 0.0
    %199 = vmatprep.subr.mxu0 0.0
    %200 = vmatpush1.xpose.msra.mxu0 0.0
    %201 = vmatprep.subr.mxu0 0.0
    %202 = vmatpush1.xpose.msra.mxu0 0.0
    %203 = vmatprep.subr.mxu0 0.0
    %204 = vmatpush1.xpose.msra.mxu0 0.0
    %205 = vmatprep.subr.mxu0 0.0
    %206 = vmatpush1.xpose.msra.mxu0 0.0
    %207 = vmatprep.subr.mxu0 0.0
    %208 = vmatpush1.xpose.msra.mxu0 0.0
    %209 = vmatprep.subr.mxu0 0.0
    %210 = vmatpush1.xpose.msra.mxu0 0.0
    %211 = vmatprep.subr.mxu0 0.0
    %212 = vmatpush1.xpose.msra.mxu0 0.0
    %213 = vmatprep.subr.mxu0 0.0
    %214 = vmatpush1.xpose.msra.mxu0 0.0
    %215 = vmatprep.subr.mxu0 0.0
    %216 = vmatpush1.xpose.msra.mxu0 0.0
    %217 = vmatprep.subr.mxu0 0.0
    %218 = vmatpush1.xpose.msra.mxu0 0.0
    %219 = vmatprep.subr.mxu0 0.0
    %220 = vmatpush1.xpose.msra.mxu0 0.0
    %221 = vmatprep.subr.mxu0 0.0
    %222 = vmatpush1.xpose.msra.mxu0 0.0
    %223 = vmatprep.subr.mxu0 0.0
    %224 = vmatpush1.xpose.msra.mxu0 0.0
    %225 = vmatprep.subr.mxu0 0.0
    %226 = vmatpush1.xpose.msra.mxu0 0.0
    %227 = vmatprep.mubr.f32.mxu0 0.0
    %228 = vmatmul.mubr.f32.gmra.mrb[0].mxu0 %v155
    %v229 = vpop.f32.mrb[0].mxu0
    %v230 = vadd.f32 0.0, %v229
    %v231 = vpop.f32.mrb[0].mxu0
    %232 = vdwg.mxu0
    %v233 = vmul.f32 %v230, 5.0
    %vm234 = vcmask 80896
    %v235 = vsel %vm234, %v233, -inf
    %236 = vmax.xlane.f32.xlu0 %v235
    %v237 = vpop.xlane.xlu0 %236
    %v238 = vsub.f32 %v233, %v237
    %v239 = vmul.f32 %v238, 1.442695
    %v240 = vpow.pop %v239
    %v241 = vsel %vm234, %v240, 0.0
    %242 = vadd.xlane.f32.xlu0 %v241
    %v243 = vpop.xlane.xlu0 %242
    %v244 = vrcp.pop %v243
    %v245 = vmul.f32 %v240, %v244
    %v246 = vlog2.pop %v243
    %v247 = vmul.f32 %v246, 0.6931472
    %v248 = vsub.f32 %v238, %v247
    %vm249 = vcmp.gt.f32.partialorder %v245, 0.0
    %v250 = vmul.f32 %v245, %v248
    %v251 = vsel %vm249, %v250, 0.0
    %v253 = vcombine.high %v245, %v245
    %v255 = vunpack.c.l.s4 1966171168
    %v256 = vunpack.c.0.s8 %v255
    %v257 = vlaneseq
    %v258 = vshrl.u32 %v257, 7
    %v259 = vsub.s32 %v256, %v258
    %v260 = vrot.slane %v245, %v259
    %v262 = vunpack.c.l.s4 1966171168
    %v263 = vunpack.c.0.s8 %v262
    %v264 = vlaneseq
    %v265 = vshrl.u32 %v264, 7
    %v266 = vsub.s32 %v263, %v265
    %v267 = vrot.slane %v253, %v266
    %v268 = vcombine.high %v260, %v260
    %v269 = vcombine.high %v267, %v267
    %v271 = vunpack.c.l.s4 1966171168
    %v272 = vunpack.c.0.s8 %v271
    %v273 = vlaneseq
    %v274 = vshrl.u32 %v273, 7
    %v275 = vsub.s32 %v272, %v274
    %v276 = vrot.slane %v260, %v275
    %v278 = vunpack.c.l.s4 1966171168
    %v279 = vunpack.c.0.s8 %v278
    %v280 = vlaneseq
    %v281 = vshrl.u32 %v280, 7
    %v282 = vsub.s32 %v279, %v281
    %v283 = vrot.slane %v267, %v282
    %v285 = vunpack.c.l.s4 1966171168
    %v286 = vunpack.c.0.s8 %v285
    %v287 = vlaneseq
    %v288 = vshrl.u32 %v287, 7
    %v289 = vsub.s32 %v286, %v288
    %v290 = vrot.slane %v268, %v289
    %v292 = vunpack.c.l.s4 1966171168
    %v293 = vunpack.c.0.s8 %v292
    %v294 = vlaneseq
    %v295 = vshrl.u32 %v294, 7
    %v296 = vsub.s32 %v293, %v295
    %v297 = vrot.slane %v269, %v296
    %v298 = vcombine.high %v276, %v276
    %v299 = vcombine.high %v283, %v283
    %v300 = vcombine.high %v290, %v290
    %v301 = vcombine.high %v297, %v297
    %v302 = vlaneseq
    %v303 = vshrl.u32 %v302, 7
    %v304 = vsub.s32 0, %v303
    %v305 = vrot.slane %v276, %v304
    %v306 = vlaneseq
    %v307 = vshrl.u32 %v306, 7
    %v308 = vsub.s32 0, %v307
    %v309 = vrot.slane %v290, %v308
    %v310 = vlaneseq
    %v311 = vshrl.u32 %v310, 7
    %v312 = vsub.s32 0, %v311
    %v313 = vrot.slane %v298, %v312
    %v314 = vlaneseq
    %v315 = vshrl.u32 %v314, 7
    %v316 = vsub.s32 0, %v315
    %v317 = vrot.slane %v300, %v316
    %v318 = vlaneseq
    %v319 = vshrl.u32 %v318, 7
    %v320 = vsub.s32 0, %v319
    %v321 = vrot.slane %v283, %v320
    %v322 = vlaneseq
    %v323 = vshrl.u32 %v322, 7
    %v324 = vsub.s32 0, %v323
    %v325 = vrot.slane %v297, %v324
    %v326 = vlaneseq
    %v327 = vshrl.u32 %v326, 7
    %v328 = vsub.s32 0, %v327
    %v329 = vrot.slane %v299, %v328
    %v330 = vlaneseq
    %v331 = vshrl.u32 %v330, 7
    %v332 = vsub.s32 0, %v331
    %v333 = vrot.slane %v301, %v332
    %v342 = vadd.f32 %v305, %v245
    %v343 = vadd.f32 %v309, %v245
    %v344 = vadd.f32 %v313, %v245
    %v345 = vadd.f32 %v317, %v245
    %v346 = vadd.f32 %v321, %v245
    %v347 = vadd.f32 %v325, %v245
    %v348 = vadd.f32 %v329, %v245
    %v349 = vadd.f32 %v333, %v245
    %vm350 = vcmp.gt.f32.partialorder %v342, 0.0
    %vm351 = vcmp.gt.f32.partialorder %v343, 0.0
    %vm352 = vcmp.gt.f32.partialorder %v344, 0.0
    %vm353 = vcmp.gt.f32.partialorder %v345, 0.0
    %vm354 = vcmp.gt.f32.partialorder %v346, 0.0
    %vm355 = vcmp.gt.f32.partialorder %v347, 0.0
    %vm356 = vcmp.gt.f32.partialorder %v348, 0.0
    %vm357 = vcmp.gt.f32.partialorder %v349, 0.0
    %v358 = vmul.f32 %v342, 0.5
    %v359 = vmul.f32 %v343, 0.5
    %v360 = vmul.f32 %v344, 0.5
    %v361 = vmul.f32 %v345, 0.5
    %v362 = vmul.f32 %v346, 0.5
    %v363 = vmul.f32 %v347, 0.5
    %v364 = vmul.f32 %v348, 0.5
    %v365 = vmul.f32 %v349, 0.5
    %v366 = vlog2.pop %v358
    %v367 = vmul.f32 %v366, 0.6931472
    %v368 = vlog2.pop %v359
    %v369 = vmul.f32 %v368, 0.6931472
    %v370 = vlog2.pop %v360
    %v371 = vmul.f32 %v370, 0.6931472
    %v372 = vlog2.pop %v361
    %v373 = vmul.f32 %v372, 0.6931472
    %v374 = vlog2.pop %v362
    %v375 = vmul.f32 %v374, 0.6931472
    %v376 = vlog2.pop %v363
    %v377 = vmul.f32 %v376, 0.6931472
    %v378 = vlog2.pop %v364
    %v379 = vmul.f32 %v378, 0.6931472
    %v380 = vlog2.pop %v365
    %v381 = vmul.f32 %v380, 0.6931472
    %v382 = vmul.f32 %v342, %v367
    %v383 = vmul.f32 %v343, %v369
    %v384 = vmul.f32 %v344, %v371
    %v385 = vmul.f32 %v345, %v373
    %v386 = vmul.f32 %v346, %v375
    %v387 = vmul.f32 %v347, %v377
    %v388 = vmul.f32 %v348, %v379
    %v389 = vmul.f32 %v349, %v381
    %v390 = vsel %vm350, %v382, 0.0
    %v391 = vsel %vm351, %v383, 0.0
    %v392 = vsel %vm352, %v384, 0.0
    %v393 = vsel %vm353, %v385, 0.0
    %v394 = vsel %vm354, %v386, 0.0
    %v395 = vsel %vm355, %v387, 0.0
    %v396 = vsel %vm356, %v388, 0.0
    %v397 = vsel %vm357, %v389, 0.0
    %v399 = vcombine.high %v251, %v251
    %v401 = vunpack.c.l.s4 1966171168
    %v402 = vunpack.c.0.s8 %v401
    %v403 = vlaneseq
    %v404 = vshrl.u32 %v403, 7
    %v405 = vsub.s32 %v402, %v404
    %v406 = vrot.slane %v251, %v405
    %v408 = vunpack.c.l.s4 1966171168
    %v409 = vunpack.c.0.s8 %v408
    %v410 = vlaneseq
    %v411 = vshrl.u32 %v410, 7
    %v412 = vsub.s32 %v409, %v411
    %v413 = vrot.slane %v399, %v412
    %v414 = vcombine.high %v406, %v406
    %v415 = vcombine.high %v413, %v413
    %v417 = vunpack.c.l.s4 1966171168
    %v418 = vunpack.c.0.s8 %v417
    %v419 = vlaneseq
    %v420 = vshrl.u32 %v419, 7
    %v421 = vsub.s32 %v418, %v420
    %v422 = vrot.slane %v406, %v421
    %v424 = vunpack.c.l.s4 1966171168
    %v425 = vunpack.c.0.s8 %v424
    %v426 = vlaneseq
    %v427 = vshrl.u32 %v426, 7
    %v428 = vsub.s32 %v425, %v427
    %v429 = vrot.slane %v413, %v428
    %v431 = vunpack.c.l.s4 1966171168
    %v432 = vunpack.c.0.s8 %v431
    %v433 = vlaneseq
    %v434 = vshrl.u32 %v433, 7
    %v435 = vsub.s32 %v432, %v434
    %v436 = vrot.slane %v414, %v435
    %v438 = vunpack.c.l.s4 1966171168
    %v439 = vunpack.c.0.s8 %v438
    %v440 = vlaneseq
    %v441 = vshrl.u32 %v440, 7
    %v442 = vsub.s32 %v439, %v441
    %v443 = vrot.slane %v415, %v442
    %v444 = vcombine.high %v422, %v422
    %v445 = vcombine.high %v429, %v429
    %v446 = vcombine.high %v436, %v436
    %v447 = vcombine.high %v443, %v443
    %v448 = vlaneseq
    %v449 = vshrl.u32 %v448, 7
    %v450 = vsub.s32 0, %v449
    %v451 = vrot.slane %v422, %v450
    %v452 = vlaneseq
    %v453 = vshrl.u32 %v452, 7
    %v454 = vsub.s32 0, %v453
    %v455 = vrot.slane %v436, %v454
    %v456 = vlaneseq
    %v457 = vshrl.u32 %v456, 7
    %v458 = vsub.s32 0, %v457
    %v459 = vrot.slane %v444, %v458
    %v460 = vlaneseq
    %v461 = vshrl.u32 %v460, 7
    %v462 = vsub.s32 0, %v461
    %v463 = vrot.slane %v446, %v462
    %v464 = vlaneseq
    %v465 = vshrl.u32 %v464, 7
    %v466 = vsub.s32 0, %v465
    %v467 = vrot.slane %v429, %v466
    %v468 = vlaneseq
    %v469 = vshrl.u32 %v468, 7
    %v470 = vsub.s32 0, %v469
    %v471 = vrot.slane %v443, %v470
    %v472 = vlaneseq
    %v473 = vshrl.u32 %v472, 7
    %v474 = vsub.s32 0, %v473
    %v475 = vrot.slane %v445, %v474
    %v476 = vlaneseq
    %v477 = vshrl.u32 %v476, 7
    %v478 = vsub.s32 0, %v477
    %v479 = vrot.slane %v447, %v478
    %v488 = vadd.f32 %v451, %v251
    %v489 = vadd.f32 %v455, %v251
    %v490 = vadd.f32 %v459, %v251
    %v491 = vadd.f32 %v463, %v251
    %v492 = vadd.f32 %v467, %v251
    %v493 = vadd.f32 %v471, %v251
    %v494 = vadd.f32 %v475, %v251
    %v495 = vadd.f32 %v479, %v251
    %v496 = vsub.f32 %v488, %v390
    %v497 = vsub.f32 %v489, %v391
    %v498 = vsub.f32 %v490, %v392
    %v499 = vsub.f32 %v491, %v393
    %v500 = vsub.f32 %v492, %v394
    %v501 = vsub.f32 %v493, %v395
    %v502 = vsub.f32 %v494, %v396
    %v503 = vsub.f32 %v495, %v397
    %v504 = vsel %vm234, %v496, 0.0
    %505 = vadd.xlane.f32.xlu0 %v504
    %v506 = vpop.xlane.xlu0 %505
    %v507 = vsel %vm234, %v497, 0.0
    %508 = vadd.xlane.f32.xlu0 %v507
    %v509 = vpop.xlane.xlu0 %508
    %v510 = vsel %vm234, %v498, 0.0
    %511 = vadd.xlane.f32.xlu0 %v510
    %v512 = vpop.xlane.xlu0 %511
    %v513 = vsel %vm234, %v499, 0.0
    %514 = vadd.xlane.f32.xlu0 %v513
    %v515 = vpop.xlane.xlu0 %514
    %v516 = vsel %vm234, %v500, 0.0
    %517 = vadd.xlane.f32.xlu0 %v516
    %v518 = vpop.xlane.xlu0 %517
    %v519 = vsel %vm234, %v501, 0.0
    %520 = vadd.xlane.f32.xlu0 %v519
    %v521 = vpop.xlane.xlu0 %520
    %v522 = vsel %vm234, %v502, 0.0
    %523 = vadd.xlane.f32.xlu0 %v522
    %v524 = vpop.xlane.xlu0 %523
    %v525 = vsel %vm234, %v503, 0.0
    %526 = vadd.xlane.f32.xlu0 %v525
    %v527 = vpop.xlane.xlu0 %526
    %v528 = vmul.f32 %v506, 0.5
    %v529 = vmul.f32 %v509, 0.5
    %v530 = vmul.f32 %v512, 0.5
    %v531 = vmul.f32 %v515, 0.5
    %v532 = vmul.f32 %v518, 0.5
    %v533 = vmul.f32 %v521, 0.5
    %v534 = vmul.f32 %v524, 0.5
    %v535 = vmul.f32 %v527, 0.5
    %v537 = vlaneseq
    %v538 = vshrl.u32 %v537, 7
    %v539 = vsub.s32 0, %v538
    %v540 = vrot.slane %v29, %v539
    %542 = vbcast.lane.b32.xlu0 %v540, 256
    %v543 = vpop.permute.xlu0 %542
    %v544 = vlaneseq
    %v545 = vshrl.u32 %v544, 7
    %v546 = vsub.s32 1, %v545
    %v547 = vrot.slane %v29, %v546
    %549 = vbcast.lane.b32.xlu0 %v547, 256
    %v550 = vpop.permute.xlu0 %549
    %v551 = vlaneseq
    %v552 = vshrl.u32 %v551, 7
    %v553 = vsub.s32 2, %v552
    %v554 = vrot.slane %v29, %v553
    %556 = vbcast.lane.b32.xlu0 %v554, 256
    %v557 = vpop.permute.xlu0 %556
    %v558 = vlaneseq
    %v559 = vshrl.u32 %v558, 7
    %v560 = vsub.s32 3, %v559
    %v561 = vrot.slane %v29, %v560
    %563 = vbcast.lane.b32.xlu0 %v561, 256
    %v564 = vpop.permute.xlu0 %563
    %v565 = vlaneseq
    %v566 = vshrl.u32 %v565, 7
    %v567 = vsub.s32 4, %v566
    %v568 = vrot.slane %v29, %v567
    %570 = vbcast.lane.b32.xlu0 %v568, 256
    %v571 = vpop.permute.xlu0 %570
    %v572 = vlaneseq
    %v573 = vshrl.u32 %v572, 7
    %v574 = vsub.s32 5, %v573
    %v575 = vrot.slane %v29, %v574
    %577 = vbcast.lane.b32.xlu0 %v575, 256
    %v578 = vpop.permute.xlu0 %577
    %v579 = vlaneseq
    %v580 = vshrl.u32 %v579, 7
    %v581 = vsub.s32 6, %v580
    %v582 = vrot.slane %v29, %v581
    %584 = vbcast.lane.b32.xlu0 %v582, 256
    %v585 = vpop.permute.xlu0 %584
    %v586 = vlaneseq
    %v587 = vshrl.u32 %v586, 7
    %v588 = vsub.s32 7, %v587
    %v589 = vrot.slane %v29, %v588
    %591 = vbcast.lane.b32.xlu0 %v589, 256
    %v592 = vpop.permute.xlu0 %591
    %v601 = vmul.f32 %v528, %v543
    %v602 = vmul.f32 %v529, %v550
    %v603 = vmul.f32 %v530, %v557
    %v604 = vmul.f32 %v531, %v564
    %v605 = vmul.f32 %v532, %v571
    %v606 = vmul.f32 %v533, %v578
    %v607 = vmul.f32 %v534, %v585
    %v608 = vmul.f32 %v535, %v592
    %617 = vset.pattern.permute.xlu0 0
    %618 = vperm.xlu0 %617, %v601
    %v619 = vpop.permute.xlu0 %618
    %620 = vset.pattern.permute.xlu0 0
    %621 = vperm.xlu0 %620, %v602
    %v622 = vpop.permute.xlu0 %621
    %623 = vset.pattern.permute.xlu0 0
    %624 = vperm.xlu0 %623, %v603
    %v625 = vpop.permute.xlu0 %624
    %626 = vset.pattern.permute.xlu0 0
    %627 = vperm.xlu0 %626, %v604
    %v628 = vpop.permute.xlu0 %627
    %629 = vset.pattern.permute.xlu0 0
    %630 = vperm.xlu0 %629, %v605
    %v631 = vpop.permute.xlu0 %630
    %632 = vset.pattern.permute.xlu0 0
    %633 = vperm.xlu0 %632, %v606
    %v634 = vpop.permute.xlu0 %633
    %635 = vset.pattern.permute.xlu0 0
    %636 = vperm.xlu0 %635, %v607
    %v637 = vpop.permute.xlu0 %636
    %638 = vset.pattern.permute.xlu0 0
    %639 = vperm.xlu0 %638, %v608
    %v640 = vpop.permute.xlu0 %639
    %v641 = vlaneseq
    %v642 = vand.u32 %v641, 127
    %v643 = vlaneseq
    %v644 = vshrl.u32 %v643, 7
    %v645 = vsub.s32 %v642, %v644
    %v646 = vrot.slane %v619, %v645
    %v647 = vlaneseq
    %v648 = vshrl.u32 %v647, 7
    %v649 = vsub.s32 %v642, %v648
    %v650 = vrot.slane %v622, %v649
    %v651 = vlaneseq
    %v652 = vshrl.u32 %v651, 7
    %v653 = vsub.s32 %v642, %v652
    %v654 = vrot.slane %v625, %v653
    %v655 = vlaneseq
    %v656 = vshrl.u32 %v655, 7
    %v657 = vsub.s32 %v642, %v656
    %v658 = vrot.slane %v628, %v657
    %v659 = vlaneseq
    %v660 = vshrl.u32 %v659, 7
    %v661 = vsub.s32 %v642, %v660
    %v662 = vrot.slane %v631, %v661
    %v663 = vlaneseq
    %v664 = vshrl.u32 %v663, 7
    %v665 = vsub.s32 %v642, %v664
    %v666 = vrot.slane %v634, %v665
    %v667 = vlaneseq
    %v668 = vshrl.u32 %v667, 7
    %v669 = vsub.s32 %v642, %v668
    %v670 = vrot.slane %v637, %v669
    %v671 = vlaneseq
    %v672 = vshrl.u32 %v671, 7
    %v673 = vsub.s32 %v642, %v672
    %v674 = vrot.slane %v640, %v673
    %vm675 = vcmask 1041409
    %v676 = vsel %vm675, %v650, %v646
    %vm677 = vcmask 1042434
    %v678 = vsel %vm677, %v654, %v676
    %vm679 = vcmask 1043459
    %v680 = vsel %vm679, %v658, %v678
    %vm681 = vcmask 1044484
    %v682 = vsel %vm681, %v662, %v680
    %vm683 = vcmask 1045509
    %v684 = vsel %vm683, %v666, %v682
    %vm685 = vcmask 1046534
    %v686 = vsel %vm685, %v670, %v684
    %vm687 = vcmask 1047559
    %v688 = vsel %vm687, %v674, %v686
    %vm690 = vcmask 64512
    %v691 = vsel %vm690, %v688, 0.0
    %692 = vadd.xlane.f32.xlu0 %v691
    %v693 = vpop.xlane.xlu0 %692
    %v694 = vrot.slane %v693, 4
    %v695 = vadd.f32 %v693, %v694
    %v696 = vrot.slane %v695, 2
    %v697 = vadd.f32 %v695, %v696
    %v698 = vrot.slane %v697, 1
    %v699 = vadd.f32 %v697, %v698
    %s700 = vtos %v699
    %v701 = vstv %s700
    %vm702 = vcmask 0
    %703 = vst.msk [vmem:[#allocation2] sm:$0x1] %vm702, %v701
    // Predicated region
    $region22: #{tpu_custom_call.1} parent=1 // pred_check
      _
    $region23: #{tpu_custom_call.1} parent=1 // pred_check_branch
      %705 = sbr.rel (0) target = $region25
    $region24: #{tpu_custom_call.1} parent=1 // pred_region
      %s707 = ssub.s32 16, 16
      %708 = vsyncadd [#allocation3], %s707
      %s710 = sshll.u32 [#allocation2], 4
      %s711 = int_to_ptr.vmem [resolvable:$true] %s710
      %713 = dma.vmem_to_hbm [thread:$0]  %s711, 16, %s5, [#allocation3]
    $region25: #{tpu_custom_call.1} parent=1 // pred_fallthru
      _
    // Predicated region
    $region26: #{tpu_custom_call.1} parent=1 // pred_check
      _
    $region27: #{tpu_custom_call.1} parent=1 // pred_check_branch
      %715 = sbr.rel (0) target = $region29
    $region28: #{tpu_custom_call.1} parent=1 // pred_region
      %716 = dma.done [#allocation3], 16
    $region29: #{tpu_custom_call.1} parent=1 // pred_fallthru
      _
    %717 = vsyncpa [#allocation3], 1

</llo_original>
